<compile_context>
chip_gen: v7x
topology: tpu7x:2x2x1
jax: 0.10.0
libtpu: 0.0.40
codegen_flags: <defaults>
</compile_context>

<pallas_src>
import functools

import jax
import jax.numpy as jnp
from jax import lax
from jax.experimental import pallas as pl
from jax.experimental.pallas import tpu as pltpu


def _round_up(n, m):
    return ((n + m - 1) // m) * m


def _round_down(n, m):
    return (n // m) * m


def _simple_lr_kernel(x_ref, w_ref, b_ref, o_ref, *, k, seg, chunk):
    # x_ref: (tbp, W=k*seg) VMEM  packed activations (k logical rows per packed row)
    # w_ref: (1, W)          VMEM  weight row tiled k times (resident across the grid)
    # b_ref: (1,)            SMEM  bias scalar
    # o_ref: (k, tbp)        VMEM  o[j, p] = sigmoid(w . x[p*k + j] + b)  (lane-dense rows)
    tbp = x_ref.shape[0]
    w = w_ref[...].astype(jnp.float32)          # (1, W)
    bias = b_ref[0]

    def process(start, size):                   # size is a static Python int
        x = x_ref[pl.ds(start, size), :].astype(jnp.float32)    # (size, W)
        prod = x * w                                             # VPU, broadcasts row
        for j in range(k):                                       # static unroll, k small
            logits = jnp.sum(prod[:, j * seg:(j + 1) * seg], axis=-1) + bias  # (size,)
            vals = 1.0 / (1.0 + jnp.exp(-logits))                # EUP exp
            o_ref[j, pl.ds(start, size)] = vals.astype(o_ref.dtype)

    n_full = tbp // chunk
    rem = tbp - n_full * chunk

    if n_full > 0:
        def body(c, carry):
            process(pl.multiple_of(c * chunk, chunk), chunk)
            return carry
        lax.fori_loop(0, n_full, body, 0)
    if rem > 0:
        process(n_full * chunk, rem)


def _choose_pack(batch, n_features):
    """k logical rows packed per 128-lane packed row (1 = no packing)."""
    if 1 <= n_features <= 128 and 128 % n_features == 0:
        k = 128 // n_features           # power of two
        while k > 1 and batch % k != 0:  # free reshape requires k | batch
            k //= 2
        return k
    return 1


_TARGET_BLOCK_BYTES = 8 << 20   # ~8 MiB of x per grid step (diminishing returns above)
_MIN_GRID_STEPS = 4             # v7x: 2 TCs x double-buffering


def _auto_block_rows(num_rows, vmem_row_bytes):
    by_bytes = max(128, _round_down(_TARGET_BLOCK_BYTES // max(1, vmem_row_bytes), 128))
    by_steps = max(128, _round_up(pl.cdiv(num_rows, _MIN_GRID_STEPS), 128))
    return min(by_bytes, by_steps)


@functools.partial(jax.jit, static_argnames=("block_rows",))
def simple_lr_forward(x, w, b, *, block_rows=None):
    """sigmoid(x @ w + b). x: (B, F) f32/bf16; w: (F,1)/(1,F)/(F,); b: scalar/(1,) -> (B,1) f32."""
    batch, n_features = x.shape
    w_row = jnp.reshape(w, (1, n_features)).astype(jnp.float32)
    b_vec = jnp.reshape(jnp.asarray(b, jnp.float32), (1,))

    k = _choose_pack(batch, n_features)
    seg = n_features
    width = k * seg                              # packed row width (128 when packing)
    rows = batch // k                            # packed row count
    x_packed = jnp.reshape(x, (rows, width))     # contiguous -> free view, no HBM copy
    w_packed = jnp.tile(w_row, (1, k))           # (1, width)

    itemsize = jnp.dtype(x.dtype).itemsize
    vmem_row_bytes = _round_up(width, 128) * itemsize   # lane-padded VMEM footprint/row

    if block_rows is None:
        tbp = _auto_block_rows(rows, vmem_row_bytes)
    else:
        tbp = max(128, _round_down(int(block_rows), 128))
    if tbp >= rows:
        tbp = rows                               # single full block (full-dim exemption)
    num_blocks = pl.cdiv(rows, tbp)              # last block may overhang -> masked

    # Inner chunk (~64 KiB of x) bounds the live vreg working set inside the big block.
    chunk = max(8, min(256, _round_down((64 << 10) // max(1, vmem_row_bytes), 8) or 8))

    kernel = functools.partial(_simple_lr_kernel, k=k, seg=seg, chunk=chunk)
    out = pl.pallas_call(
        kernel,
        out_shape=jax.ShapeDtypeStruct((k, rows), jnp.float32),
        grid=(num_blocks,),
        in_specs=[
            # Streamed x tiles, auto double-buffered by the Pallas pipeline.
            pl.BlockSpec((tbp, width), lambda i: (i, 0)),
            # Weight row: constant index_map -> loaded once, stays resident in VMEM.
            pl.BlockSpec((1, width), lambda i: (0, 0)),
            # Bias scalar in SMEM (no VMEM tile padding, no per-step DMA).
            pl.BlockSpec(memory_space=pltpu.MemorySpace.SMEM),
        ],
        out_specs=pl.BlockSpec((k, tbp), lambda i: (0, i)),
        compiler_params=pltpu.CompilerParams(
            dimension_semantics=("parallel",),
            vmem_limit_bytes=48 * 1024 * 1024,
        ),
    )(x_packed, w_packed, b_vec)

    # out[j, p] corresponds to logical row p*k + j; tiny transpose/reshape on B floats.
    return jnp.reshape(jnp.transpose(out), (batch, 1))


if __name__ == "__main__":
    key = jax.random.PRNGKey(0)
    kx1, kx2, kx3, kx4, kx5, kw, kb = jax.random.split(key, 7)

    n_features = 32
    # Deterministic init mimicking nn.Linear default: U(-1/sqrt(F), 1/sqrt(F)).
    bound = 1.0 / float(n_features) ** 0.5
    w = jax.random.uniform(kw, (n_features, 1), jnp.float32, minval=-bound, maxval=bound)
    b = jax.random.uniform(kb, (1,), jnp.float32, minval=-bound, maxval=bound)

    def reference(xs):
        xs = xs.astype(jnp.float32)
        logits = jnp.sum(xs * jnp.reshape(w, (1, -1)), axis=-1, keepdims=True) + b
        return 1.0 / (1.0 + jnp.exp(-logits))

    def check(xs, **kwargs):
        got = jax.block_until_ready(simple_lr_forward(xs, w, b, **kwargs))
        want = reference(xs)
        assert got.shape == (xs.shape[0], 1), got.shape
        err = float(jnp.max(jnp.abs(got - want)))
        assert jnp.allclose(got, want, atol=1e-5, rtol=1e-5), err

    # 1) Tiny batch, packed k=4, single full block.
    check(jax.random.normal(kx1, (8, n_features), jnp.float32))
    # 2) Batch not a multiple of 128 -> still one full (un-padded) block.
    check(jax.random.normal(kx2, (300, n_features), jnp.float32))
    # 3) Multi-step grid with an overhanging (masked) last block + inner chunk loop.
    x3 = jax.random.normal(kx3, (2400, n_features), jnp.float32)
    check(x3, block_rows=256)
    # 4) Multi-step grid at the minimum 128-row block (no pad copy, masked overhang).
    check(jax.random.normal(kx4, (1200, n_features), jnp.float32), block_rows=128)
    # 5) Odd batch -> unpacked fallback path (k=1, narrow-lane tile).
    check(jax.random.normal(kx5, (13, n_features), jnp.float32))
    # 6) bf16 activation stream (kernel upcasts to f32 internally).
    check(x3.astype(jnp.bfloat16), block_rows=256)

    print("KERNEL_OK")
</pallas_src>

<mosaic_0001>
module attributes {stable_mosaic.version = 11 : i64} {
  func.func @_simple_lr_kernel(%arg0: i32, %arg1: memref<2x128xf32, #tpu.memory_space<vmem>>, %arg2: memref<1x128xf32, #tpu.memory_space<vmem>>, %arg3: memref<1xf32, #tpu.memory_space<smem>>, %arg4: memref<4x2xf32, #tpu.memory_space<vmem>>) attributes {dimension_semantics = [#tpu.dimension_semantics<parallel>], iteration_bounds = array<i64: 1>, scalar_prefetch = 0 : i64, scratch_operands = 0 : i64, tpu.core_type = #tpu.core_type<tc>, window_params = [{transform_indices = @transform_0, window_bounds = array<i64: 2, 128>}, {pipeline_mode = #tpu.pipeline_mode<synchronous>, transform_indices = @transform_1, window_bounds = array<i64: 1, 128>}, {transform_indices = @transform_2, window_bounds = array<i64: 1>}, {transform_indices = @transform_3, window_bounds = array<i64: 4, 2>}]} {
    %c0 = arith.constant 0 : index
    %c0_0 = arith.constant 0 : index
    %0 = vector.load %arg2[%c0, %c0_0] : memref<1x128xf32, #tpu.memory_space<vmem>>, vector<1x128xf32>
    %c0_1 = arith.constant 0 : index
    %1 = memref.load %arg3[%c0_1] : memref<1xf32, #tpu.memory_space<smem>>
    %c0_2 = arith.constant 0 : index
    %c0_3 = arith.constant 0 : index
    %2 = vector.load %arg1[%c0_2, %c0_3] : memref<2x128xf32, #tpu.memory_space<vmem>>, vector<2x128xf32>
    %3 = vector.broadcast %0 : vector<1x128xf32> to vector<2x128xf32>
    %4 = arith.mulf %2, %3 : vector<2x128xf32>
    %5 = vector.extract_strided_slice %4 {offsets = [0, 0], sizes = [2, 32], strides = [1, 1]} : vector<2x128xf32> to vector<2x32xf32>
    %cst = arith.constant dense<0.000000e+00> : vector<2xf32>
    %6 = vector.multi_reduction <add>, %5, %cst [1] : vector<2x32xf32> to vector<2xf32>
    %7 = vector.broadcast %1 : f32 to vector<2xf32>
    %8 = arith.addf %6, %7 : vector<2xf32>
    %cst_4 = arith.constant 0.000000e+00 : f32
    %9 = vector.broadcast %cst_4 : f32 to vector<2xf32>
    %10 = arith.subf %9, %8 : vector<2xf32>
    %11 = math.exp %10 : vector<2xf32>
    %cst_5 = arith.constant 1.000000e+00 : f32
    %12 = vector.broadcast %cst_5 : f32 to vector<2xf32>
    %13 = arith.addf %12, %11 : vector<2xf32>
    %cst_6 = arith.constant 1.000000e+00 : f32
    %14 = vector.broadcast %cst_6 : f32 to vector<2xf32>
    %15 = arith.divf %14, %13 : vector<2xf32>
    %c0_7 = arith.constant 0 : index
    %c0_8 = arith.constant 0 : index
    %16 = vector.load %arg4[%c0_7, %c0_8] : memref<4x2xf32, #tpu.memory_space<vmem>>, vector<1x2xf32>
    %17 = vector.shape_cast %16 : vector<1x2xf32> to vector<2xf32>
    %18 = vector.shape_cast %15 : vector<2xf32> to vector<1x2xf32>
    tpu.vector_store %arg4[%c0_7, %c0_8], %18 {strides = array<i32>} : memref<4x2xf32, #tpu.memory_space<vmem>>, vector<1x2xf32>,
    %19 = vector.extract_strided_slice %4 {offsets = [0, 32], sizes = [2, 32], strides = [1, 1]} : vector<2x128xf32> to vector<2x32xf32>
    %cst_9 = arith.constant dense<0.000000e+00> : vector<2xf32>
    %20 = vector.multi_reduction <add>, %19, %cst_9 [1] : vector<2x32xf32> to vector<2xf32>
    %21 = vector.broadcast %1 : f32 to vector<2xf32>
    %22 = arith.addf %20, %21 : vector<2xf32>
    %cst_10 = arith.constant 0.000000e+00 : f32
    %23 = vector.broadcast %cst_10 : f32 to vector<2xf32>
    %24 = arith.subf %23, %22 : vector<2xf32>
    %25 = math.exp %24 : vector<2xf32>
    %cst_11 = arith.constant 1.000000e+00 : f32
    %26 = vector.broadcast %cst_11 : f32 to vector<2xf32>
    %27 = arith.addf %26, %25 : vector<2xf32>
    %cst_12 = arith.constant 1.000000e+00 : f32
    %28 = vector.broadcast %cst_12 : f32 to vector<2xf32>
    %29 = arith.divf %28, %27 : vector<2xf32>
    %c1 = arith.constant 1 : index
    %c0_13 = arith.constant 0 : index
    %30 = vector.load %arg4[%c1, %c0_13] : memref<4x2xf32, #tpu.memory_space<vmem>>, vector<1x2xf32>
    %31 = vector.shape_cast %30 : vector<1x2xf32> to vector<2xf32>
    %32 = vector.shape_cast %29 : vector<2xf32> to vector<1x2xf32>
    tpu.vector_store %arg4[%c1, %c0_13], %32 {strides = array<i32>} : memref<4x2xf32, #tpu.memory_space<vmem>>, vector<1x2xf32>,
    %33 = vector.extract_strided_slice %4 {offsets = [0, 64], sizes = [2, 32], strides = [1, 1]} : vector<2x128xf32> to vector<2x32xf32>
    %cst_14 = arith.constant dense<0.000000e+00> : vector<2xf32>
    %34 = vector.multi_reduction <add>, %33, %cst_14 [1] : vector<2x32xf32> to vector<2xf32>
    %35 = vector.broadcast %1 : f32 to vector<2xf32>
    %36 = arith.addf %34, %35 : vector<2xf32>
    %cst_15 = arith.constant 0.000000e+00 : f32
    %37 = vector.broadcast %cst_15 : f32 to vector<2xf32>
    %38 = arith.subf %37, %36 : vector<2xf32>
    %39 = math.exp %38 : vector<2xf32>
    %cst_16 = arith.constant 1.000000e+00 : f32
    %40 = vector.broadcast %cst_16 : f32 to vector<2xf32>
    %41 = arith.addf %40, %39 : vector<2xf32>
    %cst_17 = arith.constant 1.000000e+00 : f32
    %42 = vector.broadcast %cst_17 : f32 to vector<2xf32>
    %43 = arith.divf %42, %41 : vector<2xf32>
    %c2 = arith.constant 2 : index
    %c0_18 = arith.constant 0 : index
    %44 = vector.load %arg4[%c2, %c0_18] : memref<4x2xf32, #tpu.memory_space<vmem>>, vector<1x2xf32>
    %45 = vector.shape_cast %44 : vector<1x2xf32> to vector<2xf32>
    %46 = vector.shape_cast %43 : vector<2xf32> to vector<1x2xf32>
    tpu.vector_store %arg4[%c2, %c0_18], %46 {strides = array<i32>} : memref<4x2xf32, #tpu.memory_space<vmem>>, vector<1x2xf32>,
    %47 = vector.extract_strided_slice %4 {offsets = [0, 96], sizes = [2, 32], strides = [1, 1]} : vector<2x128xf32> to vector<2x32xf32>
    %cst_19 = arith.constant dense<0.000000e+00> : vector<2xf32>
    %48 = vector.multi_reduction <add>, %47, %cst_19 [1] : vector<2x32xf32> to vector<2xf32>
    %49 = vector.broadcast %1 : f32 to vector<2xf32>
    %50 = arith.addf %48, %49 : vector<2xf32>
    %cst_20 = arith.constant 0.000000e+00 : f32
    %51 = vector.broadcast %cst_20 : f32 to vector<2xf32>
    %52 = arith.subf %51, %50 : vector<2xf32>
    %53 = math.exp %52 : vector<2xf32>
    %cst_21 = arith.constant 1.000000e+00 : f32
    %54 = vector.broadcast %cst_21 : f32 to vector<2xf32>
    %55 = arith.addf %54, %53 : vector<2xf32>
    %cst_22 = arith.constant 1.000000e+00 : f32
    %56 = vector.broadcast %cst_22 : f32 to vector<2xf32>
    %57 = arith.divf %56, %55 : vector<2xf32>
    %c3 = arith.constant 3 : index
    %c0_23 = arith.constant 0 : index
    %58 = vector.load %arg4[%c3, %c0_23] : memref<4x2xf32, #tpu.memory_space<vmem>>, vector<1x2xf32>
    %59 = vector.shape_cast %58 : vector<1x2xf32> to vector<2xf32>
    %60 = vector.shape_cast %57 : vector<2xf32> to vector<1x2xf32>
    tpu.vector_store %arg4[%c3, %c0_23], %60 {strides = array<i32>} : memref<4x2xf32, #tpu.memory_space<vmem>>, vector<1x2xf32>,
    return
  }
  func.func @transform_0(%arg0: i32) -> (i32, i32) {
    %c0_i32 = arith.constant 0 : i32
    %c0_i32_0 = arith.constant 0 : i32
    return %arg0, %c0_i32 : i32, i32
  }
  func.func @transform_1(%arg0: i32) -> (i32, i32) {
    %c0_i32 = arith.constant 0 : i32
    %c0_i32_0 = arith.constant 0 : i32
    %c0_i32_1 = arith.constant 0 : i32
    return %c0_i32, %c0_i32_0 : i32, i32
  }
  func.func @transform_2(%arg0: i32) -> i32 {
    %c0_i32 = arith.constant 0 : i32
    %c0_i32_0 = arith.constant 0 : i32
    return %c0_i32 : i32
  }
  func.func @transform_3(%arg0: i32) -> (i32, i32) {
    %c0_i32 = arith.constant 0 : i32
    %c0_i32_0 = arith.constant 0 : i32
    return %c0_i32, %arg0 : i32, i32
  }
}

</mosaic_0001>

<llo_original>
// kernel: simple_lr_forward.1
$region0: #{simple_lr_forward.1}
  #allocation0 [shape = 'u32[]', space=smem, size = 0x4, offset = 0x4, fixed_abs, tag = 'smem constant byte address 0x4 - core index']
  #allocation1 [shape = 'u32[144,128]{1,0:T(1,128)}', space=vmem, size = 0x12000, scoped, tag = 'internal scratch']
  #allocation2 [shape = 'f32[1]{0:T(128)S(6)}', space=smem, size = 0x200, scoped, tag = 'scoped memory for simple_lr_forward.1']
  %s0 = inlined_call_operand.vmem [shape: f32[2,128], index: 0, kind: input, shape index: {}]
  %s1 = inlined_call_operand.vmem [shape: f32[1,128], index: 1, kind: input, shape index: {}]
  %s2 = inlined_call_operand.<no memory space> [shape: f32[1], index: 2, kind: input, shape index: {}]
  %s3 = inlined_call_operand.vmem [shape: f32[4,2], index: 3, kind: output, shape index: {}]
  %s4 = sld [smem:[#allocation0]]
  $region22: #{simple_lr_forward.1} parent=0
    _
  %s6 = ssub.s32 1, %s4
  %s7 = scalar_select 0, %s6, %s4
  %8 = sst [smem:[#allocation2]] %s2
  // Predicated region
  $region2: #{simple_lr_forward.1} parent=0 // pred_check
    _
  $region3: #{simple_lr_forward.1} parent=0 // pred_check_branch
    %10 = sbr.rel (0) target = $region5
  $region4: #{simple_lr_forward.1} parent=0 // pred_region
    _
  $region5: #{simple_lr_forward.1} parent=0 // pred_fallthru
    _
  // Predicated region
  $region6: #{simple_lr_forward.1} parent=0 // pred_check
    _
  $region7: #{simple_lr_forward.1} parent=0 // pred_check_branch
    %12 = sbr.rel (0) target = $region9
  $region8: #{simple_lr_forward.1} parent=0 // pred_region
    _
  $region9: #{simple_lr_forward.1} parent=0 // pred_fallthru
    _
  // Predicated region
  $region10: #{simple_lr_forward.1} parent=0 // pred_check
    _
  $region11: #{simple_lr_forward.1} parent=0 // pred_check_branch
    %14 = sbr.rel (0) target = $region13
  $region12: #{simple_lr_forward.1} parent=0 // pred_region
    _
  $region13: #{simple_lr_forward.1} parent=0 // pred_fallthru
    _
  %v15 = vld [vmem:[%s1] sm:$0x1]
  %s16 = sld [smem:[#allocation2]]
  %v17 = vld [vmem:[%s0] sm:$0x3]
  %v19 = vlaneseq
  %v20 = vshrl.u32 %v19, 7
  %v21 = vsub.s32 0, %v20
  %v22 = vrot.slane %v15, %v21
  %v24 = vmul.f32 %v17, %v22
  %vm25 = vcmask 254976
  %v26 = vsel %vm25, %v24, 0.0
  %27 = vadd.xlane.f32.xlu0 %v26
  %v28 = vpop.xlane.xlu0 %27
  %v29 = vstv %s16
  %v30 = vadd.f32 %v28, %v29
  %v31 = vsub.f32 0.0, %v30
  %v32 = vmul.f32 %v31, 1.442695
  %v33 = vpow.pop %v32
  %v34 = vadd.f32 %v33, 1.0
  %v35 = vrcp.pop %v34
  %v36 = vmul.f32 1.0, %v35
  %v38 = vlaneseq
  %v39 = vand.u32 %v38, 127
  %v40 = vlaneseq
  %v41 = vshrl.u32 %v40, 7
  %v42 = vsub.s32 %v39, %v41
  %v43 = vrot.slane %v36, %v42
  %vm45 = vcmask 8192
  %46 = vst.msk [vmem:[%s3] sm:$0x1] %vm45, %v43
  %48 = vrot.lane.b32.xlu0 %v24, 96
  %v49 = vpop.permute.xlu0 %48
  %v51 = vsel %vm25, %v49, 0.0
  %52 = vadd.xlane.f32.xlu0 %v51
  %v53 = vpop.xlane.xlu0 %52
  %v54 = vadd.f32 %v53, %v29
  %v55 = vsub.f32 0.0, %v54
  %v56 = vmul.f32 %v55, 1.442695
  %v57 = vpow.pop %v56
  %v58 = vadd.f32 %v57, 1.0
  %v59 = vrcp.pop %v58
  %v60 = vmul.f32 1.0, %v59
  %v62 = vlaneseq
  %v63 = vshrl.u32 %v62, 7
  %v64 = vsub.s32 %v39, %v63
  %v65 = vrot.slane %v60, %v64
  %67 = vst.msk [vmem:[%s3 + $0x1] sm:$0x1] %vm45, %v65
  %68 = vrot.lane.b32.xlu0 %v24, 64
  %v69 = vpop.permute.xlu0 %68
  %v71 = vsel %vm25, %v69, 0.0
  %72 = vadd.xlane.f32.xlu0 %v71
  %v73 = vpop.xlane.xlu0 %72
  %v74 = vadd.f32 %v73, %v29
  %v75 = vsub.f32 0.0, %v74
  %v76 = vmul.f32 %v75, 1.442695
  %v77 = vpow.pop %v76
  %v78 = vadd.f32 %v77, 1.0
  %v79 = vrcp.pop %v78
  %v80 = vmul.f32 1.0, %v79
  %v82 = vlaneseq
  %v83 = vshrl.u32 %v82, 7
  %v84 = vsub.s32 %v39, %v83
  %v85 = vrot.slane %v80, %v84
  %87 = vst.msk [vmem:[%s3 + $0x2] sm:$0x1] %vm45, %v85
  %88 = vrot.lane.b32.xlu0 %v24, 32
  %v89 = vpop.permute.xlu0 %88
  %v91 = vsel %vm25, %v89, 0.0
  %92 = vadd.xlane.f32.xlu0 %v91
  %v93 = vpop.xlane.xlu0 %92
  %v94 = vadd.f32 %v93, %v29
  %v95 = vsub.f32 0.0, %v94
  %v96 = vmul.f32 %v95, 1.442695
  %v97 = vpow.pop %v96
  %v98 = vadd.f32 %v97, 1.0
  %v99 = vrcp.pop %v98
  %v100 = vmul.f32 1.0, %v99
  %v102 = vlaneseq
  %v103 = vshrl.u32 %v102, 7
  %v104 = vsub.s32 %v39, %v103
  %v105 = vrot.slane %v100, %v104
  %107 = vst.msk [vmem:[%s3 + $0x3] sm:$0x1] %vm45, %v105
  // Predicated region
  $region14: #{simple_lr_forward.1} parent=0 // pred_check
    _
  $region15: #{simple_lr_forward.1} parent=0 // pred_check_branch
    %109 = sbr.rel (0) target = $region17
  $region16: #{simple_lr_forward.1} parent=0 // pred_region
    _
  $region17: #{simple_lr_forward.1} parent=0 // pred_fallthru
    _
  // Predicated region
  $region18: #{simple_lr_forward.1} parent=0 // pred_check
    _
  $region19: #{simple_lr_forward.1} parent=0 // pred_check_branch
    %111 = sbr.rel (0) target = $region21
  $region20: #{simple_lr_forward.1} parent=0 // pred_region
    _
  $region21: #{simple_lr_forward.1} parent=0 // pred_fallthru
    _

</llo_original>
